<compile_context>
chip_gen: v5e
topology: v5e:2x2
jax: 0.10.0
libtpu: 0.0.40
codegen_flags: <defaults>
</compile_context>

<pallas_src>
import functools

import jax
import jax.numpy as jnp
from jax.experimental import pallas as pl
from jax.experimental.pallas import tpu as pltpu

_LANE = 128                 # lane width (last-dim alignment unit)
_SUBLANE = 8                # sublane width (second-to-last alignment unit)
_DEFAULT_BLOCK_BATCH = 512  # max batch tile; tiles are balanced below this


def _round_up(n, m):
    return ((n + m - 1) // m) * m


def policy_kernel(x_ref, w1_ref, w2_ref, w3_ref, w4_ref, b_ref, o_ref):
    """Fused 4-layer MLP + tanh head for one batch tile.

    Matmuls run on the MXU in the weights' dtype (bf16 on the fast path) with
    f32 accumulation; bias add / ReLU / tanh run in f32, with the down-cast
    fused onto the ReLU result.
    """
    cdt = w1_ref.dtype
    hidden = w1_ref.shape[1]
    n4 = w4_ref.shape[1]

    biases = b_ref[...]                 # (4, bw) f32, tiny, static slices below
    b1 = biases[0:1, :hidden]
    b2 = biases[1:2, :hidden]
    b3 = biases[2:3, :hidden]
    b4 = biases[3:4, :n4]

    x = x_ref[...].astype(cdt)          # no-op when x already in compute dtype

    h = jnp.maximum(
        jnp.dot(x, w1_ref[...], preferred_element_type=jnp.float32) + b1,
        0.0).astype(cdt)
    h = jnp.maximum(
        jnp.dot(h, w2_ref[...], preferred_element_type=jnp.float32) + b2,
        0.0).astype(cdt)
    h = jnp.maximum(
        jnp.dot(h, w3_ref[...], preferred_element_type=jnp.float32) + b3,
        0.0).astype(cdt)
    out = jnp.dot(h, w4_ref[...], preferred_element_type=jnp.float32) + b4
    o_ref[...] = jnp.tanh(out).astype(o_ref.dtype)


def init_policy_params(key, state_dim, action_dim, hidden_size=256):
    """PyTorch-Linear-style init: U(-1/sqrt(fan_in), 1/sqrt(fan_in)).

    Weights stored as (in_features, out_features) so y = x @ W + b matches
    torch's nn.Linear.  Biases kept as (1, out_features) rows.
    """
    dims = [(state_dim, hidden_size),
            (hidden_size, hidden_size),
            (hidden_size, hidden_size),
            (hidden_size, action_dim)]
    params = {}
    keys = jax.random.split(key, 2 * len(dims))
    for i, (fan_in, fan_out) in enumerate(dims):
        bound = 1.0 / jnp.sqrt(jnp.float32(fan_in))
        w = jax.random.uniform(keys[2 * i], (fan_in, fan_out),
                               minval=-bound, maxval=bound, dtype=jnp.float32)
        b = jax.random.uniform(keys[2 * i + 1], (1, fan_out),
                               minval=-bound, maxval=bound, dtype=jnp.float32)
        params[f"w{i + 1}"] = w
        params[f"b{i + 1}"] = b
    return params


def prepare_params(params, compute_dtype=jnp.bfloat16):
    """One-time, wrapper-side layout prep for the kernel.

    * w1 is kept unpadded (state_dim, hidden): Mosaic pads the K contraction
      internally in VMEM, so no HBM inflation;
    * w4's output lanes are zero-padded action_dim -> 128 so the final matmul
      and the output store are lane-dense;
    * weights cast to the MXU compute dtype (bf16 by default);
    * the four bias rows are packed into a single resident f32 array
      (4, max(hidden, 128)) -> one BlockSpec / DMA descriptor instead of four.
    """
    state_dim, hidden = params["w1"].shape
    action_dim = params["w4"].shape[1]
    n4 = _round_up(action_dim, _LANE)
    bw = max(hidden, n4)

    w4 = jnp.zeros((hidden, n4), compute_dtype).at[:, :action_dim].set(
        params["w4"].astype(compute_dtype))

    b_packed = jnp.zeros((4, bw), jnp.float32)
    b_packed = b_packed.at[0, :hidden].set(params["b1"].reshape(-1))
    b_packed = b_packed.at[1, :hidden].set(params["b2"].reshape(-1))
    b_packed = b_packed.at[2, :hidden].set(params["b3"].reshape(-1))
    b_packed = b_packed.at[3, :action_dim].set(params["b4"].reshape(-1))

    return {
        "w1": params["w1"].astype(compute_dtype),
        "w2": params["w2"].astype(compute_dtype),
        "w3": params["w3"].astype(compute_dtype),
        "w4": w4,
        "b": b_packed,
    }


@functools.partial(jax.jit, static_argnames=("action_dim", "block_batch"))
def policy_forward(x, prepared, action_dim, block_batch=_DEFAULT_BLOCK_BATCH):
    """x: (B, state_dim) float32. prepared: output of prepare_params.

    Returns (B, action_dim) float32 actions in (-1, 1).
    """
    batch, state_dim = x.shape
    hidden = prepared["w1"].shape[1]
    n4 = prepared["w4"].shape[1]
    bw = prepared["b"].shape[1]
    cdt = prepared["w1"].dtype
    out_dtype = cdt  # bf16 on the fast path halves the writeback stream

    # Balanced batch tiles: at most block_batch rows each, at least 2 tiles
    # when the batch allows (keeps both v7x TensorCores busy), minimal tail
    # padding (rounded to the 8-row sublane).
    n_tiles = max(pl.cdiv(batch, block_batch),
                  2 if batch >= 2 * _SUBLANE else 1)
    tb = _round_up(pl.cdiv(batch, n_tiles), _SUBLANE)
    b_pad = n_tiles * tb

    if b_pad != batch:
        # Pad copy is unavoidable -> build it directly in the compute dtype.
        x_in = jnp.zeros((b_pad, state_dim), cdt).at[:batch, :].set(
            x.astype(cdt))
    else:
        # No pad copy needed; kernel casts in place (no extra XLA op).
        x_in = x

    vmem = pltpu.MemorySpace.VMEM

    def resident(shape):
        # Constant block index -> stays in VMEM across all grid steps.
        return pl.BlockSpec(shape, lambda i: (0, 0), memory_space=vmem)

    in_specs = [
        pl.BlockSpec((tb, state_dim), lambda i: (i, 0), memory_space=vmem),  # x
        resident((state_dim, hidden)),   # w1
        resident((hidden, hidden)),      # w2
        resident((hidden, hidden)),      # w3
        resident((hidden, n4)),          # w4
        resident((4, bw)),               # packed biases
    ]
    out_specs = pl.BlockSpec((tb, n4), lambda i: (i, 0), memory_space=vmem)

    w_bytes = sum(int(prepared[k].size) * prepared[k].dtype.itemsize
                  for k in ("w1", "w2", "w3", "w4", "b"))
    cost = pl.CostEstimate(
        flops=2 * b_pad * (state_dim * hidden
                           + 2 * hidden * hidden
                           + hidden * n4),
        transcendentals=b_pad * action_dim,
        bytes_accessed=int(x_in.size) * x_in.dtype.itemsize
        + w_bytes
        + b_pad * n4 * jnp.dtype(out_dtype).itemsize,
    )

    out_padded = pl.pallas_call(
        policy_kernel,
        out_shape=jax.ShapeDtypeStruct((b_pad, n4), out_dtype),
        grid=(b_pad // tb,),
        in_specs=in_specs,
        out_specs=out_specs,
        compiler_params=pltpu.CompilerParams(
            dimension_semantics=("parallel",)),
        cost_estimate=cost,
    )(x_in,
      prepared["w1"], prepared["w2"], prepared["w3"], prepared["w4"],
      prepared["b"])

    return out_padded[:batch, :action_dim].astype(jnp.float32)


def policy_forward_ref(x, params):
    """Pure-JAX f32 reference matching the PyTorch module."""
    h = jnp.maximum(x @ params["w1"] + params["b1"], 0.0)
    h = jnp.maximum(h @ params["w2"] + params["b2"], 0.0)
    h = jnp.maximum(h @ params["w3"] + params["b3"], 0.0)
    return jnp.tanh(h @ params["w4"] + params["b4"])


if __name__ == "__main__":
    state_dim, action_dim, hidden_size = 16, 4, 256

    key = jax.random.PRNGKey(0)
    k_params, k_x_small, k_x_big = jax.random.split(key, 3)

    params = init_policy_params(k_params, state_dim, action_dim, hidden_size)

    # Small batch (typical TD3 actor rollout, single tile, no pad) and a
    # larger batch that exercises the balanced 2-tile grid + tail padding.
    x_small = jax.random.normal(k_x_small, (8, state_dim), dtype=jnp.float32)
    x_big = jax.random.normal(k_x_big, (300, state_dim), dtype=jnp.float32)

    # 1) Exact-semantics check: f32 compute path vs pure-JAX f32 reference.
    prepared_f32 = prepare_params(params, compute_dtype=jnp.float32)
    out_small = jax.block_until_ready(
        policy_forward(x_small, prepared_f32, action_dim))
    ref_small = policy_forward_ref(x_small, params)
    assert out_small.shape == (8, action_dim)
    assert jnp.allclose(out_small, ref_small, atol=1e-5, rtol=1e-5), \
        "f32 kernel mismatch vs reference"

    # 2) Performance path: bf16 weights/activations/output, f32 accumulation,
    #    balanced batch tiles (300 -> 2 x 152).
    prepared_bf16 = prepare_params(params, compute_dtype=jnp.bfloat16)
    out_big = jax.block_until_ready(
        policy_forward(x_big, prepared_bf16, action_dim))
    ref_big = policy_forward_ref(x_big, params)
    assert out_big.shape == (300, action_dim)
    assert jnp.allclose(out_big, ref_big, atol=5e-2, rtol=0.0), \
        "bf16 kernel mismatch vs reference"

    print("KERNEL_OK")
</pallas_src>

<mosaic_0001>
module attributes {stable_mosaic.version = 11 : i64} {
  func.func @policy_kernel(%arg0: i32, %arg1: memref<8x16xf32, #tpu.memory_space<vmem>>, %arg2: memref<16x256xf32, #tpu.memory_space<vmem>>, %arg3: memref<256x256xf32, #tpu.memory_space<vmem>>, %arg4: memref<256x256xf32, #tpu.memory_space<vmem>>, %arg5: memref<256x128xf32, #tpu.memory_space<vmem>>, %arg6: memref<4x256xf32, #tpu.memory_space<vmem>>, %arg7: memref<8x128xf32, #tpu.memory_space<vmem>>) attributes {dimension_semantics = [#tpu.dimension_semantics<parallel>], iteration_bounds = array<i64: 1>, scalar_prefetch = 0 : i64, scratch_operands = 0 : i64, tpu.core_type = #tpu.core_type<tc>, window_params = [{transform_indices = @transform_0, window_bounds = array<i64: 8, 16>}, {pipeline_mode = #tpu.pipeline_mode<synchronous>, transform_indices = @transform_1, window_bounds = array<i64: 16, 256>}, {pipeline_mode = #tpu.pipeline_mode<synchronous>, transform_indices = @transform_2, window_bounds = array<i64: 256, 256>}, {pipeline_mode = #tpu.pipeline_mode<synchronous>, transform_indices = @transform_3, window_bounds = array<i64: 256, 256>}, {pipeline_mode = #tpu.pipeline_mode<synchronous>, transform_indices = @transform_4, window_bounds = array<i64: 256, 128>}, {pipeline_mode = #tpu.pipeline_mode<synchronous>, transform_indices = @transform_5, window_bounds = array<i64: 4, 256>}, {transform_indices = @transform_6, window_bounds = array<i64: 8, 128>}]} {
    %c0 = arith.constant 0 : index
    %c0_0 = arith.constant 0 : index
    %0 = vector.load %arg6[%c0, %c0_0] : memref<4x256xf32, #tpu.memory_space<vmem>>, vector<4x256xf32>
    %1 = vector.extract_strided_slice %0 {offsets = [0, 0], sizes = [1, 256], strides = [1, 1]} : vector<4x256xf32> to vector<1x256xf32>
    %2 = vector.extract_strided_slice %0 {offsets = [1, 0], sizes = [1, 256], strides = [1, 1]} : vector<4x256xf32> to vector<1x256xf32>
    %3 = vector.extract_strided_slice %0 {offsets = [2, 0], sizes = [1, 256], strides = [1, 1]} : vector<4x256xf32> to vector<1x256xf32>
    %4 = vector.extract_strided_slice %0 {offsets = [3, 0], sizes = [1, 128], strides = [1, 1]} : vector<4x256xf32> to vector<1x128xf32>
    %c0_1 = arith.constant 0 : index
    %c0_2 = arith.constant 0 : index
    %5 = vector.load %arg1[%c0_1, %c0_2] : memref<8x16xf32, #tpu.memory_space<vmem>>, vector<8x16xf32>
    %c0_3 = arith.constant 0 : index
    %c0_4 = arith.constant 0 : index
    %6 = vector.load %arg2[%c0_3, %c0_4] : memref<16x256xf32, #tpu.memory_space<vmem>>, vector<16x256xf32>
    %cst = arith.constant dense<0.000000e+00> : vector<8x256xf32>
    %7 = tpu.matmul %5, %6, %cst {dimension_numbers = #tpu.dot_dimension_numbers<[1], [0], [0], [1], [0, 0, 1, 1], [], []>} : vector<8x16xf32>, vector<16x256xf32>, vector<8x256xf32> -> vector<8x256xf32>
    %8 = vector.broadcast %1 : vector<1x256xf32> to vector<8x256xf32>
    %9 = arith.addf %7, %8 : vector<8x256xf32>
    %cst_5 = arith.constant 0.000000e+00 : f32
    %10 = vector.broadcast %cst_5 : f32 to vector<8x256xf32>
    %11 = arith.maximumf %9, %10 : vector<8x256xf32>
    %c0_6 = arith.constant 0 : index
    %c0_7 = arith.constant 0 : index
    %12 = vector.load %arg3[%c0_6, %c0_7] : memref<256x256xf32, #tpu.memory_space<vmem>>, vector<256x256xf32>
    %cst_8 = arith.constant dense<0.000000e+00> : vector<8x256xf32>
    %13 = tpu.matmul %11, %12, %cst_8 {dimension_numbers = #tpu.dot_dimension_numbers<[1], [0], [0], [1], [0, 0, 1, 1], [], []>} : vector<8x256xf32>, vector<256x256xf32>, vector<8x256xf32> -> vector<8x256xf32>
    %14 = vector.broadcast %2 : vector<1x256xf32> to vector<8x256xf32>
    %15 = arith.addf %13, %14 : vector<8x256xf32>
    %cst_9 = arith.constant 0.000000e+00 : f32
    %16 = vector.broadcast %cst_9 : f32 to vector<8x256xf32>
    %17 = arith.maximumf %15, %16 : vector<8x256xf32>
    %c0_10 = arith.constant 0 : index
    %c0_11 = arith.constant 0 : index
    %18 = vector.load %arg4[%c0_10, %c0_11] : memref<256x256xf32, #tpu.memory_space<vmem>>, vector<256x256xf32>
    %cst_12 = arith.constant dense<0.000000e+00> : vector<8x256xf32>
    %19 = tpu.matmul %17, %18, %cst_12 {dimension_numbers = #tpu.dot_dimension_numbers<[1], [0], [0], [1], [0, 0, 1, 1], [], []>} : vector<8x256xf32>, vector<256x256xf32>, vector<8x256xf32> -> vector<8x256xf32>
    %20 = vector.broadcast %3 : vector<1x256xf32> to vector<8x256xf32>
    %21 = arith.addf %19, %20 : vector<8x256xf32>
    %cst_13 = arith.constant 0.000000e+00 : f32
    %22 = vector.broadcast %cst_13 : f32 to vector<8x256xf32>
    %23 = arith.maximumf %21, %22 : vector<8x256xf32>
    %c0_14 = arith.constant 0 : index
    %c0_15 = arith.constant 0 : index
    %24 = vector.load %arg5[%c0_14, %c0_15] : memref<256x128xf32, #tpu.memory_space<vmem>>, vector<256x128xf32>
    %cst_16 = arith.constant dense<0.000000e+00> : vector<8x128xf32>
    %25 = tpu.matmul %23, %24, %cst_16 {dimension_numbers = #tpu.dot_dimension_numbers<[1], [0], [0], [1], [0, 0, 1, 1], [], []>} : vector<8x256xf32>, vector<256x128xf32>, vector<8x128xf32> -> vector<8x128xf32>
    %26 = vector.broadcast %4 : vector<1x128xf32> to vector<8x128xf32>
    %27 = arith.addf %25, %26 : vector<8x128xf32>
    %28 = math.tanh %27 : vector<8x128xf32>
    %c0_17 = arith.constant 0 : index
    %c0_18 = arith.constant 0 : index
    %29 = vector.load %arg7[%c0_17, %c0_18] : memref<8x128xf32, #tpu.memory_space<vmem>>, vector<8x128xf32>
    tpu.vector_store %arg7[%c0_17, %c0_18], %28 {strides = array<i32>} : memref<8x128xf32, #tpu.memory_space<vmem>>, vector<8x128xf32>,
    return
  }
  func.func @transform_0(%arg0: i32) -> (i32, i32) {
    %c0_i32 = arith.constant 0 : i32
    %c0_i32_0 = arith.constant 0 : i32
    return %arg0, %c0_i32 : i32, i32
  }
  func.func @transform_1(%arg0: i32) -> (i32, i32) {
    %c0_i32 = arith.constant 0 : i32
    %c0_i32_0 = arith.constant 0 : i32
    %c0_i32_1 = arith.constant 0 : i32
    return %c0_i32, %c0_i32_0 : i32, i32
  }
  func.func @transform_2(%arg0: i32) -> (i32, i32) {
    %c0_i32 = arith.constant 0 : i32
    %c0_i32_0 = arith.constant 0 : i32
    %c0_i32_1 = arith.constant 0 : i32
    return %c0_i32, %c0_i32_0 : i32, i32
  }
  func.func @transform_3(%arg0: i32) -> (i32, i32) {
    %c0_i32 = arith.constant 0 : i32
    %c0_i32_0 = arith.constant 0 : i32
    %c0_i32_1 = arith.constant 0 : i32
    return %c0_i32, %c0_i32_0 : i32, i32
  }
  func.func @transform_4(%arg0: i32) -> (i32, i32) {
    %c0_i32 = arith.constant 0 : i32
    %c0_i32_0 = arith.constant 0 : i32
    %c0_i32_1 = arith.constant 0 : i32
    return %c0_i32, %c0_i32_0 : i32, i32
  }
  func.func @transform_5(%arg0: i32) -> (i32, i32) {
    %c0_i32 = arith.constant 0 : i32
    %c0_i32_0 = arith.constant 0 : i32
    %c0_i32_1 = arith.constant 0 : i32
    return %c0_i32, %c0_i32_0 : i32, i32
  }
  func.func @transform_6(%arg0: i32) -> (i32, i32) {
    %c0_i32 = arith.constant 0 : i32
    %c0_i32_0 = arith.constant 0 : i32
    return %arg0, %c0_i32 : i32, i32
  }
}

</mosaic_0001>

<llo_original>
// kernel: policy_forward.1
$region0: #{policy_forward.1}
  #allocation0 [shape = 'u32[]', space=smem, size = 0x4, offset = 0x4, fixed_abs, tag = 'smem constant byte address 0x4 - core index']
  #allocation1 [shape = 'u32[72,128]{1,0:T(1,128)}', space=vmem, size = 0x9000, scoped, tag = 'internal scratch']
  %s0 = inlined_call_operand.hbm [shape: f32[8,16], index: 0, kind: input, shape index: {}]
  %s1 = inlined_call_operand.hbm [shape: f32[16,256], index: 1, kind: input, shape index: {}]
  %s2 = inlined_call_operand.hbm [shape: f32[256,256], index: 2, kind: input, shape index: {}]
  %s3 = inlined_call_operand.hbm [shape: f32[256,256], index: 3, kind: input, shape index: {}]
  %s4 = inlined_call_operand.hbm [shape: f32[256,128], index: 4, kind: input, shape index: {}]
  %s5 = inlined_call_operand.hbm [shape: f32[4,256], index: 5, kind: input, shape index: {}]
  %s6 = inlined_call_operand.vmem [shape: f32[8,128], index: 6, kind: output, shape index: {}]
  %s7 = sld [smem:[#allocation0]]
  $region58: #{policy_forward.1} parent=0
    _
  %s9 = ssub.s32 1, %s7
  %s10 = scalar_select 0, %s9, %s7
  $region1: #{policy_forward.1} parent=0
    #allocation2 [shape = 'u8[4096]{0}', space=vmem, size = 0x1000, scoped, tag = 'input window, operand 0, single buffered']
    #allocation3 [shape = 's32[1]{0}', space=sflag, size = 0x4, scoped, tag = 'scoped memory for policy_forward.1']
    #allocation4 [shape = 'u8[16384]{0}', space=vmem, size = 0x4000, scoped, tag = 'input window, operand 1, single buffered']
    #allocation5 [shape = 's32[1]{0}', space=sflag, size = 0x4, scoped, tag = 'scoped memory for policy_forward.1']
    #allocation6 [shape = 'u8[262144]{0}', space=vmem, size = 0x40000, scoped, tag = 'input window, operand 2, single buffered']
    #allocation7 [shape = 'u8[262144]{0}', space=vmem, size = 0x40000, scoped, tag = 'input window, operand 3, single buffered']
    #allocation8 [shape = 's32[1]{0}', space=sflag, size = 0x4, scoped, tag = 'scoped memory for policy_forward.1']
    #allocation9 [shape = 'u8[131072]{0}', space=vmem, size = 0x20000, scoped, tag = 'input window, operand 4, single buffered']
    #allocation10 [shape = 'u8[4096]{0}', space=vmem, size = 0x1000, scoped, tag = 'input window, operand 5, single buffered']
    #allocation11 [shape = 's32[1]{0}', space=sflag, size = 0x4, scoped, tag = 'scoped memory for policy_forward.1']
    %11 = vsyncpa [#allocation3], 0
    %12 = vsyncpa [#allocation5], 0
    %13 = vsyncpa [#allocation8], 0
    %14 = vsyncpa [#allocation11], 0
    // Predicated region
    $region2: #{policy_forward.1} parent=1 // pred_check
      _
    $region3: #{policy_forward.1} parent=1 // pred_check_branch
      %16 = sbr.rel (0) target = $region5
    $region4: #{policy_forward.1} parent=1 // pred_region
      %18 = vsyncadd [#allocation3], 0
      %s20 = sshll.u32 %s0, 4
      %s21 = int_to_ptr.hbm [resolvable:$true] %s20
      %s22 = sshll.u32 [#allocation2], 4
      %s23 = int_to_ptr.vmem [resolvable:$true] %s22
      %25 = dma.hbm_to_vmem [thread:$0]  %s21, 128, %s23, [#allocation3]
    $region5: #{policy_forward.1} parent=1 // pred_fallthru
      _
    // Predicated region
    $region6: #{policy_forward.1} parent=1 // pred_check
      _
    $region7: #{policy_forward.1} parent=1 // pred_check_branch
      %27 = sbr.rel (0) target = $region9
    $region8: #{policy_forward.1} parent=1 // pred_region
      %29 = vsyncadd [#allocation5], 0
      %s30 = sshll.u32 %s1, 4
      %s31 = int_to_ptr.hbm [resolvable:$true] %s30
      %s32 = sshll.u32 [#allocation4], 4
      %s33 = int_to_ptr.vmem [resolvable:$true] %s32
      %38 = dma.hbm_to_vmem [thread:$0]  %s31, 512, %s33, [#allocation5], 256, 256, 16
    $region9: #{policy_forward.1} parent=1 // pred_fallthru
      _
    // Predicated region
    $region10: #{policy_forward.1} parent=1 // pred_check
      _
    $region11: #{policy_forward.1} parent=1 // pred_check_branch
      %40 = sbr.rel (0) target = $region13
    $region12: #{policy_forward.1} parent=1 // pred_region
      %42 = vsyncadd [#allocation5], 0
      %s43 = sshll.u32 %s2, 4
      %s44 = int_to_ptr.hbm [resolvable:$true] %s43
      %s45 = sshll.u32 [#allocation6], 4
      %s46 = int_to_ptr.vmem [resolvable:$true] %s45
      %51 = dma.hbm_to_vmem [thread:$0]  %s44, 8192, %s46, [#allocation5], 256, 256, 16
    $region13: #{policy_forward.1} parent=1 // pred_fallthru
      _
    // Predicated region
    $region14: #{policy_forward.1} parent=1 // pred_check
      _
    $region15: #{policy_forward.1} parent=1 // pred_check_branch
      %53 = sbr.rel (0) target = $region17
    $region16: #{policy_forward.1} parent=1 // pred_region
      %55 = vsyncadd [#allocation8], 0
      %s56 = sshll.u32 %s3, 4
      %s57 = int_to_ptr.hbm [resolvable:$true] %s56
      %s58 = sshll.u32 [#allocation7], 4
      %s59 = int_to_ptr.vmem [resolvable:$true] %s58
      %64 = dma.hbm_to_vmem [thread:$0]  %s57, 8192, %s59, [#allocation8], 256, 256, 16
    $region17: #{policy_forward.1} parent=1 // pred_fallthru
      _
    // Predicated region
    $region18: #{policy_forward.1} parent=1 // pred_check
      _
    $region19: #{policy_forward.1} parent=1 // pred_check_branch
      %66 = sbr.rel (0) target = $region21
    $region20: #{policy_forward.1} parent=1 // pred_region
      %68 = vsyncadd [#allocation8], 0
      %s69 = sshll.u32 %s4, 4
      %s70 = int_to_ptr.hbm [resolvable:$true] %s69
      %s71 = sshll.u32 [#allocation9], 4
      %s72 = int_to_ptr.vmem [resolvable:$true] %s71
      %77 = dma.hbm_to_vmem [thread:$0]  %s70, 4096, %s72, [#allocation8], 128, 128, 8
    $region21: #{policy_forward.1} parent=1 // pred_fallthru
      _
    // Predicated region
    $region22: #{policy_forward.1} parent=1 // pred_check
      _
    $region23: #{policy_forward.1} parent=1 // pred_check_branch
      %79 = sbr.rel (0) target = $region25
    $region24: #{policy_forward.1} parent=1 // pred_region
      %81 = vsyncadd [#allocation11], 0
      %s83 = sshll.u32 %s5, 4
      %s84 = int_to_ptr.hbm [resolvable:$true] %s83
      %s85 = sshll.u32 [#allocation10], 4
      %s86 = int_to_ptr.vmem [resolvable:$true] %s85
      %88 = dma.hbm_to_vmem [thread:$0]  %s84, 128, %s86, [#allocation11]
    $region25: #{policy_forward.1} parent=1 // pred_fallthru
      _
    // Predicated region
    $region26: #{policy_forward.1} parent=1 // pred_check
      _
    $region27: #{policy_forward.1} parent=1 // pred_check_branch
      %90 = sbr.rel (0) target = $region29
    $region28: #{policy_forward.1} parent=1 // pred_region
      %92 = dma.done [#allocation3], 128
    $region29: #{policy_forward.1} parent=1 // pred_fallthru
      _
    // Predicated region
    $region30: #{policy_forward.1} parent=1 // pred_check
      _
    $region31: #{policy_forward.1} parent=1 // pred_check_branch
      %94 = sbr.rel (0) target = $region33
    $region32: #{policy_forward.1} parent=1 // pred_region
      %96 = dma.done [#allocation5], 512
    $region33: #{policy_forward.1} parent=1 // pred_fallthru
      _
    // Predicated region
    $region34: #{policy_forward.1} parent=1 // pred_check
      _
    $region35: #{policy_forward.1} parent=1 // pred_check_branch
      %98 = sbr.rel (0) target = $region37
    $region36: #{policy_forward.1} parent=1 // pred_region
      %100 = dma.done [#allocation5], 8192
    $region37: #{policy_forward.1} parent=1 // pred_fallthru
      _
    // Predicated region
    $region38: #{policy_forward.1} parent=1 // pred_check
      _
    $region39: #{policy_forward.1} parent=1 // pred_check_branch
      %102 = sbr.rel (0) target = $region41
    $region40: #{policy_forward.1} parent=1 // pred_region
      %104 = dma.done [#allocation8], 8192
    $region41: #{policy_forward.1} parent=1 // pred_fallthru
      _
    // Predicated region
    $region42: #{policy_forward.1} parent=1 // pred_check
      _
    $region43: #{policy_forward.1} parent=1 // pred_check_branch
      %106 = sbr.rel (0) target = $region45
    $region44: #{policy_forward.1} parent=1 // pred_region
      %108 = dma.done [#allocation8], 4096
    $region45: #{policy_forward.1} parent=1 // pred_fallthru
      _
    // Predicated region
    $region46: #{policy_forward.1} parent=1 // pred_check
      _
    $region47: #{policy_forward.1} parent=1 // pred_check_branch
      %110 = sbr.rel (0) target = $region49
    $region48: #{policy_forward.1} parent=1 // pred_region
      %112 = dma.done [#allocation11], 128
    $region49: #{policy_forward.1} parent=1 // pred_fallthru
      _
    %v113 = vld [vmem:[#allocation10] sm:$0xff]
    %v114 = vld [vmem:[#allocation2] sm:$0xff]
    %v115 = vld [vmem:[#allocation4] sm:$0xff]
    %v116 = vld [vmem:[#allocation4 + $0x8] sm:$0xff]
    %v117 = vld [vmem:[#allocation4 + $0x10] sm:$0xff]
    %v118 = vld [vmem:[#allocation4 + $0x18] sm:$0xff]
    %v120 = vperm.slane %v113, 0
    %v121 = vperm.slane %v113, 4
    %v124 = vperm.slane %v120, 0
    %v125 = vperm.slane %v121, 0
    %vm126 = vcmask 130048
    %v128 = vsel %vm126, %v114, 0
    %130 = vmatpush.msra.mxu0 0.0
    %131 = vmatpush.msra.mxu0 0.0
    %132 = vmatpush.msra.mxu0 0.0
    %133 = vmatpush.msra.mxu0 0.0
    %134 = vmatpush.msra.mxu0 0.0
    %135 = vmatpush.msra.mxu0 0.0
    %136 = vmatpush.msra.mxu0 0.0
    %137 = vmatpush.msra.mxu0 0.0
    %138 = vmatpush.msra.mxu0 0.0
    %139 = vmatpush.msra.mxu0 0.0
    %140 = vmatpush.msra.mxu0 0.0
    %141 = vmatpush.msra.mxu0 0.0
    %142 = vmatpush.msra.mxu0 0.0
    %143 = vmatpush.msra.mxu0 0.0
    %144 = vmatpush.msra.mxu0 %v117
    %145 = vmatpush.msra.mxu0 %v115
    %146 = vmatmul.f32.gmra.mxu0 %v128
    %v147 = vpop.f32.mrf.mxu0
    %v148 = vadd.f32 %v124, %v147
    %149 = vdwg.mxu0
    %150 = vmatpush.msra.mxu0 0.0
    %151 = vmatpush.msra.mxu0 0.0
    %152 = vmatpush.msra.mxu0 0.0
    %153 = vmatpush.msra.mxu0 0.0
    %154 = vmatpush.msra.mxu0 0.0
    %155 = vmatpush.msra.mxu0 0.0
    %156 = vmatpush.msra.mxu0 0.0
    %157 = vmatpush.msra.mxu0 0.0
    %158 = vmatpush.msra.mxu0 0.0
    %159 = vmatpush.msra.mxu0 0.0
    %160 = vmatpush.msra.mxu0 0.0
    %161 = vmatpush.msra.mxu0 0.0
    %162 = vmatpush.msra.mxu0 0.0
    %163 = vmatpush.msra.mxu0 0.0
    %164 = vmatpush.msra.mxu0 %v118
    %165 = vmatpush.msra.mxu0 %v116
    %166 = vmatmul.f32.gmra.mxu0 %v128
    %v167 = vpop.f32.mrf.mxu0
    %v168 = vadd.f32 %v125, %v167
    %169 = vdwg.mxu0
    %v170 = vmax.f32 %v148, 0.0
    %v171 = vmax.f32 %v168, 0.0
    %v172 = vld [vmem:[#allocation6] sm:$0xff]
    %v173 = vld [vmem:[#allocation6 + $0x8] sm:$0xff]
    %v174 = vld [vmem:[#allocation6 + $0x10] sm:$0xff]
    %v175 = vld [vmem:[#allocation6 + $0x18] sm:$0xff]
    %v176 = vld [vmem:[#allocation6 + $0x20] sm:$0xff]
    %v177 = vld [vmem:[#allocation6 + $0x28] sm:$0xff]
    %v178 = vld [vmem:[#allocation6 + $0x30] sm:$0xff]
    %v179 = vld [vmem:[#allocation6 + $0x38] sm:$0xff]
    %v180 = vld [vmem:[#allocation6 + $0x40] sm:$0xff]
    %v181 = vld [vmem:[#allocation6 + $0x48] sm:$0xff]
    %v182 = vld [vmem:[#allocation6 + $0x50] sm:$0xff]
    %v183 = vld [vmem:[#allocation6 + $0x58] sm:$0xff]
    %v184 = vld [vmem:[#allocation6 + $0x60] sm:$0xff]
    %v185 = vld [vmem:[#allocation6 + $0x68] sm:$0xff]
    %v186 = vld [vmem:[#allocation6 + $0x70] sm:$0xff]
    %v187 = vld [vmem:[#allocation6 + $0x78] sm:$0xff]
    %v188 = vld [vmem:[#allocation6 + $0x80] sm:$0xff]
    %v189 = vld [vmem:[#allocation6 + $0x88] sm:$0xff]
    %v190 = vld [vmem:[#allocation6 + $0x90] sm:$0xff]
    %v191 = vld [vmem:[#allocation6 + $0x98] sm:$0xff]
    %v192 = vld [vmem:[#allocation6 + $0xa0] sm:$0xff]
    %v193 = vld [vmem:[#allocation6 + $0xa8] sm:$0xff]
    %v194 = vld [vmem:[#allocation6 + $0xb0] sm:$0xff]
    %v195 = vld [vmem:[#allocation6 + $0xb8] sm:$0xff]
    %v196 = vld [vmem:[#allocation6 + $0xc0] sm:$0xff]
    %v197 = vld [vmem:[#allocation6 + $0xc8] sm:$0xff]
    %v198 = vld [vmem:[#allocation6 + $0xd0] sm:$0xff]
    %v199 = vld [vmem:[#allocation6 + $0xd8] sm:$0xff]
    %v200 = vld [vmem:[#allocation6 + $0xe0] sm:$0xff]
    %v201 = vld [vmem:[#allocation6 + $0xe8] sm:$0xff]
    %v202 = vld [vmem:[#allocation6 + $0xf0] sm:$0xff]
    %v203 = vld [vmem:[#allocation6 + $0xf8] sm:$0xff]
    %v204 = vld [vmem:[#allocation6 + $0x100] sm:$0xff]
    %v205 = vld [vmem:[#allocation6 + $0x108] sm:$0xff]
    %v206 = vld [vmem:[#allocation6 + $0x110] sm:$0xff]
    %v207 = vld [vmem:[#allocation6 + $0x118] sm:$0xff]
    %v208 = vld [vmem:[#allocation6 + $0x120] sm:$0xff]
    %v209 = vld [vmem:[#allocation6 + $0x128] sm:$0xff]
    %v210 = vld [vmem:[#allocation6 + $0x130] sm:$0xff]
    %v211 = vld [vmem:[#allocation6 + $0x138] sm:$0xff]
    %v212 = vld [vmem:[#allocation6 + $0x140] sm:$0xff]
    %v213 = vld [vmem:[#allocation6 + $0x148] sm:$0xff]
    %v214 = vld [vmem:[#allocation6 + $0x150] sm:$0xff]
    %v215 = vld [vmem:[#allocation6 + $0x158] sm:$0xff]
    %v216 = vld [vmem:[#allocation6 + $0x160] sm:$0xff]
    %v217 = vld [vmem:[#allocation6 + $0x168] sm:$0xff]
    %v218 = vld [vmem:[#allocation6 + $0x170] sm:$0xff]
    %v219 = vld [vmem:[#allocation6 + $0x178] sm:$0xff]
    %v220 = vld [vmem:[#allocation6 + $0x180] sm:$0xff]
    %v221 = vld [vmem:[#allocation6 + $0x188] sm:$0xff]
    %v222 = vld [vmem:[#allocation6 + $0x190] sm:$0xff]
    %v223 = vld [vmem:[#allocation6 + $0x198] sm:$0xff]
    %v224 = vld [vmem:[#allocation6 + $0x1a0] sm:$0xff]
    %v225 = vld [vmem:[#allocation6 + $0x1a8] sm:$0xff]
    %v226 = vld [vmem:[#allocation6 + $0x1b0] sm:$0xff]
    %v227 = vld [vmem:[#allocation6 + $0x1b8] sm:$0xff]
    %v228 = vld [vmem:[#allocation6 + $0x1c0] sm:$0xff]
    %v229 = vld [vmem:[#allocation6 + $0x1c8] sm:$0xff]
    %v230 = vld [vmem:[#allocation6 + $0x1d0] sm:$0xff]
    %v231 = vld [vmem:[#allocation6 + $0x1d8] sm:$0xff]
    %v232 = vld [vmem:[#allocation6 + $0x1e0] sm:$0xff]
    %v233 = vld [vmem:[#allocation6 + $0x1e8] sm:$0xff]
    %v234 = vld [vmem:[#allocation6 + $0x1f0] sm:$0xff]
    %v235 = vld [vmem:[#allocation6 + $0x1f8] sm:$0xff]
    %v236 = vperm.slane %v113, 1
    %v237 = vperm.slane %v113, 5
    %v240 = vperm.slane %v236, 1
    %v241 = vperm.slane %v237, 1
    %242 = vmatpush.msra.mxu0 %v202
    %243 = vmatpush.msra.mxu0 %v200
    %244 = vmatpush.msra.mxu0 %v198
    %245 = vmatpush.msra.mxu0 %v196
    %246 = vmatpush.msra.mxu0 %v194
    %247 = vmatpush.msra.mxu0 %v192
    %248 = vmatpush.msra.mxu0 %v190
    %249 = vmatpush.msra.mxu0 %v188
    %250 = vmatpush.msra.mxu0 %v186
    %251 = vmatpush.msra.mxu0 %v184
    %252 = vmatpush.msra.mxu0 %v182
    %253 = vmatpush.msra.mxu0 %v180
    %254 = vmatpush.msra.mxu0 %v178
    %255 = vmatpush.msra.mxu0 %v176
    %256 = vmatpush.msra.mxu0 %v174
    %257 = vmatpush.msra.mxu0 %v172
    %258 = vmatmul.f32.gmra.mxu0 %v170
    %v259 = vpop.f32.mrf.mxu0
    %v260 = vadd.f32 %v240, %v259
    %261 = vdwg.mxu0
    %262 = vmatpush.msra.mxu0 %v234
    %263 = vmatpush.msra.mxu0 %v232
    %264 = vmatpush.msra.mxu0 %v230
    %265 = vmatpush.msra.mxu0 %v228
    %266 = vmatpush.msra.mxu0 %v226
    %267 = vmatpush.msra.mxu0 %v224
    %268 = vmatpush.msra.mxu0 %v222
    %269 = vmatpush.msra.mxu0 %v220
    %270 = vmatpush.msra.mxu0 %v218
    %271 = vmatpush.msra.mxu0 %v216
    %272 = vmatpush.msra.mxu0 %v214
    %273 = vmatpush.msra.mxu0 %v212
    %274 = vmatpush.msra.mxu0 %v210
    %275 = vmatpush.msra.mxu0 %v208
    %276 = vmatpush.msra.mxu0 %v206
    %277 = vmatpush.msra.mxu0 %v204
    %278 = vmatmul.f32.gmra.mxu0 %v171
    %v279 = vpop.f32.mrf.mxu0
    %v280 = vadd.f32 %v260, %v279
    %281 = vdwg.mxu0
    %282 = vmatpush.msra.mxu0 %v203
    %283 = vmatpush.msra.mxu0 %v201
    %284 = vmatpush.msra.mxu0 %v199
    %285 = vmatpush.msra.mxu0 %v197
    %286 = vmatpush.msra.mxu0 %v195
    %287 = vmatpush.msra.mxu0 %v193
    %288 = vmatpush.msra.mxu0 %v191
    %289 = vmatpush.msra.mxu0 %v189
    %290 = vmatpush.msra.mxu0 %v187
    %291 = vmatpush.msra.mxu0 %v185
    %292 = vmatpush.msra.mxu0 %v183
    %293 = vmatpush.msra.mxu0 %v181
    %294 = vmatpush.msra.mxu0 %v179
    %295 = vmatpush.msra.mxu0 %v177
    %296 = vmatpush.msra.mxu0 %v175
    %297 = vmatpush.msra.mxu0 %v173
    %298 = vmatmul.f32.gmra.mxu0 %v170
    %v299 = vpop.f32.mrf.mxu0
    %v300 = vadd.f32 %v241, %v299
    %301 = vdwg.mxu0
    %302 = vmatpush.msra.mxu0 %v235
    %303 = vmatpush.msra.mxu0 %v233
    %304 = vmatpush.msra.mxu0 %v231
    %305 = vmatpush.msra.mxu0 %v229
    %306 = vmatpush.msra.mxu0 %v227
    %307 = vmatpush.msra.mxu0 %v225
    %308 = vmatpush.msra.mxu0 %v223
    %309 = vmatpush.msra.mxu0 %v221
    %310 = vmatpush.msra.mxu0 %v219
    %311 = vmatpush.msra.mxu0 %v217
    %312 = vmatpush.msra.mxu0 %v215
    %313 = vmatpush.msra.mxu0 %v213
    %314 = vmatpush.msra.mxu0 %v211
    %315 = vmatpush.msra.mxu0 %v209
    %316 = vmatpush.msra.mxu0 %v207
    %317 = vmatpush.msra.mxu0 %v205
    %318 = vmatmul.f32.gmra.mxu0 %v171
    %v319 = vpop.f32.mrf.mxu0
    %v320 = vadd.f32 %v300, %v319
    %321 = vdwg.mxu0
    %v322 = vmax.f32 %v280, 0.0
    %v323 = vmax.f32 %v320, 0.0
    %v324 = vld [vmem:[#allocation7] sm:$0xff]
    %v325 = vld [vmem:[#allocation7 + $0x8] sm:$0xff]
    %v326 = vld [vmem:[#allocation7 + $0x10] sm:$0xff]
    %v327 = vld [vmem:[#allocation7 + $0x18] sm:$0xff]
    %v328 = vld [vmem:[#allocation7 + $0x20] sm:$0xff]
    %v329 = vld [vmem:[#allocation7 + $0x28] sm:$0xff]
    %v330 = vld [vmem:[#allocation7 + $0x30] sm:$0xff]
    %v331 = vld [vmem:[#allocation7 + $0x38] sm:$0xff]
    %v332 = vld [vmem:[#allocation7 + $0x40] sm:$0xff]
    %v333 = vld [vmem:[#allocation7 + $0x48] sm:$0xff]
    %v334 = vld [vmem:[#allocation7 + $0x50] sm:$0xff]
    %v335 = vld [vmem:[#allocation7 + $0x58] sm:$0xff]
    %v336 = vld [vmem:[#allocation7 + $0x60] sm:$0xff]
    %v337 = vld [vmem:[#allocation7 + $0x68] sm:$0xff]
    %v338 = vld [vmem:[#allocation7 + $0x70] sm:$0xff]
    %v339 = vld [vmem:[#allocation7 + $0x78] sm:$0xff]
    %v340 = vld [vmem:[#allocation7 + $0x80] sm:$0xff]
    %v341 = vld [vmem:[#allocation7 + $0x88] sm:$0xff]
    %v342 = vld [vmem:[#allocation7 + $0x90] sm:$0xff]
    %v343 = vld [vmem:[#allocation7 + $0x98] sm:$0xff]
    %v344 = vld [vmem:[#allocation7 + $0xa0] sm:$0xff]
    %v345 = vld [vmem:[#allocation7 + $0xa8] sm:$0xff]
    %v346 = vld [vmem:[#allocation7 + $0xb0] sm:$0xff]
    %v347 = vld [vmem:[#allocation7 + $0xb8] sm:$0xff]
    %v348 = vld [vmem:[#allocation7 + $0xc0] sm:$0xff]
    %v349 = vld [vmem:[#allocation7 + $0xc8] sm:$0xff]
    %v350 = vld [vmem:[#allocation7 + $0xd0] sm:$0xff]
    %v351 = vld [vmem:[#allocation7 + $0xd8] sm:$0xff]
    %v352 = vld [vmem:[#allocation7 + $0xe0] sm:$0xff]
    %v353 = vld [vmem:[#allocation7 + $0xe8] sm:$0xff]
    %v354 = vld [vmem:[#allocation7 + $0xf0] sm:$0xff]
    %v355 = vld [vmem:[#allocation7 + $0xf8] sm:$0xff]
    %v356 = vld [vmem:[#allocation7 + $0x100] sm:$0xff]
    %v357 = vld [vmem:[#allocation7 + $0x108] sm:$0xff]
    %v358 = vld [vmem:[#allocation7 + $0x110] sm:$0xff]
    %v359 = vld [vmem:[#allocation7 + $0x118] sm:$0xff]
    %v360 = vld [vmem:[#allocation7 + $0x120] sm:$0xff]
    %v361 = vld [vmem:[#allocation7 + $0x128] sm:$0xff]
    %v362 = vld [vmem:[#allocation7 + $0x130] sm:$0xff]
    %v363 = vld [vmem:[#allocation7 + $0x138] sm:$0xff]
    %v364 = vld [vmem:[#allocation7 + $0x140] sm:$0xff]
    %v365 = vld [vmem:[#allocation7 + $0x148] sm:$0xff]
    %v366 = vld [vmem:[#allocation7 + $0x150] sm:$0xff]
    %v367 = vld [vmem:[#allocation7 + $0x158] sm:$0xff]
    %v368 = vld [vmem:[#allocation7 + $0x160] sm:$0xff]
    %v369 = vld [vmem:[#allocation7 + $0x168] sm:$0xff]
    %v370 = vld [vmem:[#allocation7 + $0x170] sm:$0xff]
    %v371 = vld [vmem:[#allocation7 + $0x178] sm:$0xff]
    %v372 = vld [vmem:[#allocation7 + $0x180] sm:$0xff]
    %v373 = vld [vmem:[#allocation7 + $0x188] sm:$0xff]
    %v374 = vld [vmem:[#allocation7 + $0x190] sm:$0xff]
    %v375 = vld [vmem:[#allocation7 + $0x198] sm:$0xff]
    %v376 = vld [vmem:[#allocation7 + $0x1a0] sm:$0xff]
    %v377 = vld [vmem:[#allocation7 + $0x1a8] sm:$0xff]
    %v378 = vld [vmem:[#allocation7 + $0x1b0] sm:$0xff]
    %v379 = vld [vmem:[#allocation7 + $0x1b8] sm:$0xff]
    %v380 = vld [vmem:[#allocation7 + $0x1c0] sm:$0xff]
    %v381 = vld [vmem:[#allocation7 + $0x1c8] sm:$0xff]
    %v382 = vld [vmem:[#allocation7 + $0x1d0] sm:$0xff]
    %v383 = vld [vmem:[#allocation7 + $0x1d8] sm:$0xff]
    %v384 = vld [vmem:[#allocation7 + $0x1e0] sm:$0xff]
    %v385 = vld [vmem:[#allocation7 + $0x1e8] sm:$0xff]
    %v386 = vld [vmem:[#allocation7 + $0x1f0] sm:$0xff]
    %v387 = vld [vmem:[#allocation7 + $0x1f8] sm:$0xff]
    %v388 = vperm.slane %v113, 2
    %v389 = vperm.slane %v113, 6
    %v392 = vperm.slane %v388, 2
    %v393 = vperm.slane %v389, 2
    %394 = vmatpush.msra.mxu0 %v354
    %395 = vmatpush.msra.mxu0 %v352
    %396 = vmatpush.msra.mxu0 %v350
    %397 = vmatpush.msra.mxu0 %v348
    %398 = vmatpush.msra.mxu0 %v346
    %399 = vmatpush.msra.mxu0 %v344
    %400 = vmatpush.msra.mxu0 %v342
    %401 = vmatpush.msra.mxu0 %v340
    %402 = vmatpush.msra.mxu0 %v338
    %403 = vmatpush.msra.mxu0 %v336
    %404 = vmatpush.msra.mxu0 %v334
    %405 = vmatpush.msra.mxu0 %v332
    %406 = vmatpush.msra.mxu0 %v330
    %407 = vmatpush.msra.mxu0 %v328
    %408 = vmatpush.msra.mxu0 %v326
    %409 = vmatpush.msra.mxu0 %v324
    %410 = vmatmul.f32.gmra.mxu0 %v322
    %v411 = vpop.f32.mrf.mxu0
    %v412 = vadd.f32 %v392, %v411
    %413 = vdwg.mxu0
    %414 = vmatpush.msra.mxu0 %v386
    %415 = vmatpush.msra.mxu0 %v384
    %416 = vmatpush.msra.mxu0 %v382
    %417 = vmatpush.msra.mxu0 %v380
    %418 = vmatpush.msra.mxu0 %v378
    %419 = vmatpush.msra.mxu0 %v376
    %420 = vmatpush.msra.mxu0 %v374
    %421 = vmatpush.msra.mxu0 %v372
    %422 = vmatpush.msra.mxu0 %v370
    %423 = vmatpush.msra.mxu0 %v368
    %424 = vmatpush.msra.mxu0 %v366
    %425 = vmatpush.msra.mxu0 %v364
    %426 = vmatpush.msra.mxu0 %v362
    %427 = vmatpush.msra.mxu0 %v360
    %428 = vmatpush.msra.mxu0 %v358
    %429 = vmatpush.msra.mxu0 %v356
    %430 = vmatmul.f32.gmra.mxu0 %v323
    %v431 = vpop.f32.mrf.mxu0
    %v432 = vadd.f32 %v412, %v431
    %433 = vdwg.mxu0
    %434 = vmatpush.msra.mxu0 %v355
    %435 = vmatpush.msra.mxu0 %v353
    %436 = vmatpush.msra.mxu0 %v351
    %437 = vmatpush.msra.mxu0 %v349
    %438 = vmatpush.msra.mxu0 %v347
    %439 = vmatpush.msra.mxu0 %v345
    %440 = vmatpush.msra.mxu0 %v343
    %441 = vmatpush.msra.mxu0 %v341
    %442 = vmatpush.msra.mxu0 %v339
    %443 = vmatpush.msra.mxu0 %v337
    %444 = vmatpush.msra.mxu0 %v335
    %445 = vmatpush.msra.mxu0 %v333
    %446 = vmatpush.msra.mxu0 %v331
    %447 = vmatpush.msra.mxu0 %v329
    %448 = vmatpush.msra.mxu0 %v327
    %449 = vmatpush.msra.mxu0 %v325
    %450 = vmatmul.f32.gmra.mxu0 %v322
    %v451 = vpop.f32.mrf.mxu0
    %v452 = vadd.f32 %v393, %v451
    %453 = vdwg.mxu0
    %454 = vmatpush.msra.mxu0 %v387
    %455 = vmatpush.msra.mxu0 %v385
    %456 = vmatpush.msra.mxu0 %v383
    %457 = vmatpush.msra.mxu0 %v381
    %458 = vmatpush.msra.mxu0 %v379
    %459 = vmatpush.msra.mxu0 %v377
    %460 = vmatpush.msra.mxu0 %v375
    %461 = vmatpush.msra.mxu0 %v373
    %462 = vmatpush.msra.mxu0 %v371
    %463 = vmatpush.msra.mxu0 %v369
    %464 = vmatpush.msra.mxu0 %v367
    %465 = vmatpush.msra.mxu0 %v365
    %466 = vmatpush.msra.mxu0 %v363
    %467 = vmatpush.msra.mxu0 %v361
    %468 = vmatpush.msra.mxu0 %v359
    %469 = vmatpush.msra.mxu0 %v357
    %470 = vmatmul.f32.gmra.mxu0 %v323
    %v471 = vpop.f32.mrf.mxu0
    %v472 = vadd.f32 %v452, %v471
    %473 = vdwg.mxu0
    %v474 = vmax.f32 %v432, 0.0
    %v475 = vmax.f32 %v472, 0.0
    %v476 = vld [vmem:[#allocation9] sm:$0xff]
    %v477 = vld [vmem:[#allocation9 + $0x8] sm:$0xff]
    %v478 = vld [vmem:[#allocation9 + $0x10] sm:$0xff]
    %v479 = vld [vmem:[#allocation9 + $0x18] sm:$0xff]
    %v480 = vld [vmem:[#allocation9 + $0x20] sm:$0xff]
    %v481 = vld [vmem:[#allocation9 + $0x28] sm:$0xff]
    %v482 = vld [vmem:[#allocation9 + $0x30] sm:$0xff]
    %v483 = vld [vmem:[#allocation9 + $0x38] sm:$0xff]
    %v484 = vld [vmem:[#allocation9 + $0x40] sm:$0xff]
    %v485 = vld [vmem:[#allocation9 + $0x48] sm:$0xff]
    %v486 = vld [vmem:[#allocation9 + $0x50] sm:$0xff]
    %v487 = vld [vmem:[#allocation9 + $0x58] sm:$0xff]
    %v488 = vld [vmem:[#allocation9 + $0x60] sm:$0xff]
    %v489 = vld [vmem:[#allocation9 + $0x68] sm:$0xff]
    %v490 = vld [vmem:[#allocation9 + $0x70] sm:$0xff]
    %v491 = vld [vmem:[#allocation9 + $0x78] sm:$0xff]
    %v492 = vld [vmem:[#allocation9 + $0x80] sm:$0xff]
    %v493 = vld [vmem:[#allocation9 + $0x88] sm:$0xff]
    %v494 = vld [vmem:[#allocation9 + $0x90] sm:$0xff]
    %v495 = vld [vmem:[#allocation9 + $0x98] sm:$0xff]
    %v496 = vld [vmem:[#allocation9 + $0xa0] sm:$0xff]
    %v497 = vld [vmem:[#allocation9 + $0xa8] sm:$0xff]
    %v498 = vld [vmem:[#allocation9 + $0xb0] sm:$0xff]
    %v499 = vld [vmem:[#allocation9 + $0xb8] sm:$0xff]
    %v500 = vld [vmem:[#allocation9 + $0xc0] sm:$0xff]
    %v501 = vld [vmem:[#allocation9 + $0xc8] sm:$0xff]
    %v502 = vld [vmem:[#allocation9 + $0xd0] sm:$0xff]
    %v503 = vld [vmem:[#allocation9 + $0xd8] sm:$0xff]
    %v504 = vld [vmem:[#allocation9 + $0xe0] sm:$0xff]
    %v505 = vld [vmem:[#allocation9 + $0xe8] sm:$0xff]
    %v506 = vld [vmem:[#allocation9 + $0xf0] sm:$0xff]
    %v507 = vld [vmem:[#allocation9 + $0xf8] sm:$0xff]
    %v508 = vperm.slane %v113, 3
    %509 = vmatpush.msra.mxu0 %v491
    %510 = vmatpush.msra.mxu0 %v490
    %511 = vmatpush.msra.mxu0 %v489
    %512 = vmatpush.msra.mxu0 %v488
    %513 = vmatpush.msra.mxu0 %v487
    %514 = vmatpush.msra.mxu0 %v486
    %515 = vmatpush.msra.mxu0 %v485
    %516 = vmatpush.msra.mxu0 %v484
    %517 = vmatpush.msra.mxu0 %v483
    %518 = vmatpush.msra.mxu0 %v482
    %519 = vmatpush.msra.mxu0 %v481
    %520 = vmatpush.msra.mxu0 %v480
    %521 = vmatpush.msra.mxu0 %v479
    %522 = vmatpush.msra.mxu0 %v478
    %523 = vmatpush.msra.mxu0 %v477
    %524 = vmatpush.msra.mxu0 %v476
    %525 = vmatmul.f32.gmra.mxu0 %v474
    %v526 = vpop.f32.mrf.mxu0
    %v527 = vadd.f32 %v508, %v526
    %528 = vdwg.mxu0
    %529 = vmatpush.msra.mxu0 %v507
    %530 = vmatpush.msra.mxu0 %v506
    %531 = vmatpush.msra.mxu0 %v505
    %532 = vmatpush.msra.mxu0 %v504
    %533 = vmatpush.msra.mxu0 %v503
    %534 = vmatpush.msra.mxu0 %v502
    %535 = vmatpush.msra.mxu0 %v501
    %536 = vmatpush.msra.mxu0 %v500
    %537 = vmatpush.msra.mxu0 %v499
    %538 = vmatpush.msra.mxu0 %v498
    %539 = vmatpush.msra.mxu0 %v497
    %540 = vmatpush.msra.mxu0 %v496
    %541 = vmatpush.msra.mxu0 %v495
    %542 = vmatpush.msra.mxu0 %v494
    %543 = vmatpush.msra.mxu0 %v493
    %544 = vmatpush.msra.mxu0 %v492
    %545 = vmatmul.f32.gmra.mxu0 %v475
    %v546 = vpop.f32.mrf.mxu0
    %v547 = vadd.f32 %v527, %v546
    %548 = vdwg.mxu0
    %v549 = vtanh.pop %v547
    %550 = vst [vmem:[%s6] sm:$0xff] %v549
    // Predicated region
    $region50: #{policy_forward.1} parent=1 // pred_check
      _
    $region51: #{policy_forward.1} parent=1 // pred_check_branch
      %552 = sbr.rel (0) target = $region53
    $region52: #{policy_forward.1} parent=1 // pred_region
      _
    $region53: #{policy_forward.1} parent=1 // pred_fallthru
      _
    // Predicated region
    $region54: #{policy_forward.1} parent=1 // pred_check
      _
    $region55: #{policy_forward.1} parent=1 // pred_check_branch
      %554 = sbr.rel (0) target = $region57
    $region56: #{policy_forward.1} parent=1 // pred_region
      _
    $region57: #{policy_forward.1} parent=1 // pred_fallthru
      _
    %555 = vsyncpa [#allocation3], 1
    %556 = vsyncpa [#allocation5], 1
    %557 = vsyncpa [#allocation8], 1
    %558 = vsyncpa [#allocation11], 1

</llo_original>
